<compile_context>
chip_gen: v7x
topology: tpu7x:2x2x1
jax: 0.10.0
libtpu: 0.0.40
codegen_flags: <defaults>
</compile_context>

<pallas_src>
import jax
import jax.numpy as jnp
from jax.experimental import pallas as pl
from jax.experimental.pallas import tpu as pltpu


def _ef_decay_kernel(ea_ref, ef_ref, out_ref):
    # ea_ref: (tE, 1)   ef_ref/out_ref: (tE, tF)
    # Lane-broadcast of ea happens in-register (replicate path).
    out_ref[...] = (ea_ref[...] * ef_ref[...]).astype(out_ref.dtype)


def _round_up(x: int, m: int) -> int:
    return ((x + m - 1) // m) * m


# 32 MiB scoped limit is safe on all generations (v5e/v6e: 128 MiB physical
# VMEM, v7x: 64 MiB physical / 32 MiB scoped default).  Budget leaves headroom
# for compiler scratch.
_VMEM_LIMIT_BYTES = 32 << 20
_VMEM_BUDGET_BYTES = 24 << 20


def _choose_tiles(E: int, F: int, itemsize: int,
                  vmem_budget_bytes: int = _VMEM_BUDGET_BYTES):
    # Lane (last-dim) tile: prefer the FULL feature dim -> contiguous HBM rows
    # and lane-dense stores.  (block == full array dim satisfies the (8,128)
    # rule even for F < 128.)  Cap at 2048 lanes (a multiple of 128) so a huge
    # F cannot blow the VMEM budget on its own.
    tile_f = F if F <= 2048 else 2048

    # Edge (sublane) tile: as large as the VMEM budget allows.  Per-grid-step
    # overhead (~0.35us) dominates at small tiles; 1024-2048 rows sits at the
    # HBM-roofline sweet spot.  Footprint is evaluated on the rounded value.
    tile_e = min(2048, _round_up(max(E, 1), 8))

    def footprint(te):
        # double-buffered: ef-in tile + out tile + ea tile
        return 2 * (2 * te * tile_f * itemsize + te * itemsize)

    while tile_e > 8 and footprint(tile_e) > vmem_budget_bytes:
        tile_e = max(8, _round_up(tile_e // 2, 8))

    return tile_e, tile_f


def ef_decay(ea: jax.Array, ef: jax.Array, *, tile_e: int | None = None,
             tile_f: int | None = None):
    """Returns (ea, ea[:, None] * ef) with the multiply done in a Pallas kernel."""
    assert ea.ndim == 1 and ef.ndim == 2 and ea.shape[0] == ef.shape[0]
    E, F = ef.shape
    out_dtype = jnp.result_type(ea.dtype, ef.dtype)
    ef_itemsize = jnp.dtype(ef.dtype).itemsize
    out_itemsize = jnp.dtype(out_dtype).itemsize

    auto_te, auto_tf = _choose_tiles(E, F, max(ef_itemsize, out_itemsize))
    tile_e = auto_te if tile_e is None else tile_e
    tile_f = auto_tf if tile_f is None else tile_f

    # No host-side padding / slicing: partial boundary blocks are read-padded
    # and write-masked by Pallas, so garbage in the overhang never reaches HBM.
    ea_2d = ea.reshape(E, 1)   # free reshape; keeps the broadcast in-kernel
    grid = (pl.cdiv(E, tile_e), pl.cdiv(F, tile_f))

    cost = pl.CostEstimate(
        flops=E * F,
        transcendentals=0,
        bytes_accessed=E * F * (ef_itemsize + out_itemsize)
        + E * jnp.dtype(ea.dtype).itemsize,
    )

    out = pl.pallas_call(
        _ef_decay_kernel,
        out_shape=jax.ShapeDtypeStruct((E, F), out_dtype),
        grid_spec=pl.GridSpec(
            grid=grid,
            in_specs=[
                pl.BlockSpec((tile_e, 1), lambda i, j: (i, 0)),
                pl.BlockSpec((tile_e, tile_f), lambda i, j: (i, j)),
            ],
            out_specs=pl.BlockSpec((tile_e, tile_f), lambda i, j: (i, j)),
        ),
        compiler_params=pltpu.CompilerParams(
            dimension_semantics=("parallel", "parallel"),
            vmem_limit_bytes=_VMEM_LIMIT_BYTES,
        ),
        cost_estimate=cost,
    )(ea_2d, ef)

    # First output is ea passed through unchanged, exactly like the module.
    return ea, out


if __name__ == "__main__":
    key = jax.random.PRNGKey(0)
    k1, k2, k3, k4, k5, k6 = jax.random.split(key, 6)

    # Case 1: lane-dense feature dim, E not a multiple of 8 -> single partial block
    E1, F1 = 300, 128
    ea1 = jax.random.normal(k1, (E1,), dtype=jnp.float32)
    ef1 = jax.random.normal(k2, (E1, F1), dtype=jnp.float32)
    ea_out1, prod1 = ef_decay(ea1, ef1)
    jax.block_until_ready((ea_out1, prod1))
    ref1 = ea1[:, None] * ef1
    assert ea_out1.shape == ea1.shape and prod1.shape == ef1.shape
    assert jnp.allclose(prod1, ref1, atol=1e-6, rtol=1e-6)
    assert jnp.array_equal(ea_out1, ea1)

    # Case 2: mixed dtypes (f32 ea, bf16 ef) and sub-128 feature dim (full-F block)
    E2, F2 = 64, 96
    ea2 = jax.random.normal(k3, (E2,), dtype=jnp.float32)
    ef2 = jax.random.normal(k4, (E2, F2), dtype=jnp.bfloat16)
    ea_out2, prod2 = ef_decay(ea2, ef2)
    jax.block_until_ready((ea_out2, prod2))
    ref2 = ea2[:, None] * ef2
    assert prod2.dtype == ref2.dtype and prod2.shape == ef2.shape
    assert jnp.allclose(prod2.astype(jnp.float32), ref2.astype(jnp.float32),
                        atol=1e-5, rtol=1e-5)
    assert jnp.array_equal(ea_out2, ea2)

    # Case 3: forced small tiles -> multi-step grid with partial boundary blocks
    # on both axes (exercises Pallas read-padding / write-masking with no host pad).
    E3, F3 = 520, 200
    ea3 = jax.random.normal(k5, (E3,), dtype=jnp.float32)
    ef3 = jax.random.normal(k6, (E3, F3), dtype=jnp.float32)
    ea_out3, prod3 = ef_decay(ea3, ef3, tile_e=256, tile_f=128)
    jax.block_until_ready((ea_out3, prod3))
    ref3 = ea3[:, None] * ef3
    assert prod3.shape == ef3.shape
    assert jnp.allclose(prod3, ref3, atol=1e-6, rtol=1e-6)
    assert jnp.array_equal(ea_out3, ea3)

    print("KERNEL_OK")
</pallas_src>

<mosaic_0001>
module attributes {stable_mosaic.version = 11 : i64} {
  func.func @_ef_decay_kernel(%arg0: i32, %arg1: i32, %arg2: memref<304x1xf32, #tpu.memory_space<vmem>>, %arg3: memref<304x128xf32, #tpu.memory_space<vmem>>, %arg4: memref<304x128xf32, #tpu.memory_space<vmem>>) attributes {dimension_semantics = [#tpu.dimension_semantics<parallel>, #tpu.dimension_semantics<parallel>], iteration_bounds = array<i64: 1, 1>, scalar_prefetch = 0 : i64, scratch_operands = 0 : i64, tpu.core_type = #tpu.core_type<tc>, window_params = [{transform_indices = @transform_0, window_bounds = array<i64: 304, 1>}, {transform_indices = @transform_1, window_bounds = array<i64: 304, 128>}, {transform_indices = @transform_2, window_bounds = array<i64: 304, 128>}]} {
    %c0 = arith.constant 0 : index
    %c0_0 = arith.constant 0 : index
    %0 = vector.load %arg2[%c0, %c0_0] : memref<304x1xf32, #tpu.memory_space<vmem>>, vector<304x1xf32>
    %c0_1 = arith.constant 0 : index
    %c0_2 = arith.constant 0 : index
    %1 = vector.load %arg3[%c0_1, %c0_2] : memref<304x128xf32, #tpu.memory_space<vmem>>, vector<304x128xf32>
    %2 = vector.broadcast %0 : vector<304x1xf32> to vector<304x128xf32>
    %3 = arith.mulf %2, %1 : vector<304x128xf32>
    %c0_3 = arith.constant 0 : index
    %c0_4 = arith.constant 0 : index
    %4 = vector.load %arg4[%c0_3, %c0_4] : memref<304x128xf32, #tpu.memory_space<vmem>>, vector<304x128xf32>
    tpu.vector_store %arg4[%c0_3, %c0_4], %3 {strides = array<i32>} : memref<304x128xf32, #tpu.memory_space<vmem>>, vector<304x128xf32>,
    return
  }
  func.func @transform_0(%arg0: i32, %arg1: i32) -> (i32, i32) {
    %c0_i32 = arith.constant 0 : i32
    %c0_i32_0 = arith.constant 0 : i32
    return %arg0, %c0_i32 : i32, i32
  }
  func.func @transform_1(%arg0: i32, %arg1: i32) -> (i32, i32) {
    %c0_i32 = arith.constant 0 : i32
    return %arg0, %arg1 : i32, i32
  }
  func.func @transform_2(%arg0: i32, %arg1: i32) -> (i32, i32) {
    %c0_i32 = arith.constant 0 : i32
    return %arg0, %arg1 : i32, i32
  }
}

</mosaic_0001>

<llo_original>
// kernel: tpu_custom_call.1
$region0: #{tpu_custom_call.1}
  #allocation0 [shape = 'u32[]', space=smem, size = 0x4, offset = 0x4, fixed_abs, tag = 'smem constant byte address 0x4 - core index']
  #allocation1 [shape = 'u32[144,128]{1,0:T(1,128)}', space=vmem, size = 0x12000, scoped, tag = 'internal scratch']
  %s0 = inlined_call_operand.vmem [shape: f32[300,1], index: 0, kind: input, shape index: {}]
  %s1 = inlined_call_operand.vmem [shape: f32[300,128], index: 1, kind: input, shape index: {}]
  %s2 = inlined_call_operand.hbm [shape: f32[300,128], index: 2, kind: output, shape index: {}]
  %s3 = sld [smem:[#allocation0]]
  $region18: #{tpu_custom_call.1} parent=0
    _
  %s5 = ssub.s32 1, %s3
  %s6 = scalar_select 0, %s5, %s3
  $region1: #{tpu_custom_call.1} parent=0
    #allocation2 [shape = 'u8[155648]{0}', space=vmem, size = 0x26000, scoped, tag = 'output window, operand 0, single buffered']
    #allocation3 [shape = 's32[1]{0}', space=sflag, size = 0x4, scoped, tag = 'scoped memory for tpu_custom_call.1']
    %7 = vsyncpa [#allocation3], 0
    // Predicated region
    $region2: #{tpu_custom_call.1} parent=1 // pred_check
      _
    $region3: #{tpu_custom_call.1} parent=1 // pred_check_branch
      %9 = sbr.rel (0) target = $region5
    $region4: #{tpu_custom_call.1} parent=1 // pred_region
      _
    $region5: #{tpu_custom_call.1} parent=1 // pred_fallthru
      _
    // Predicated region
    $region6: #{tpu_custom_call.1} parent=1 // pred_check
      _
    $region7: #{tpu_custom_call.1} parent=1 // pred_check_branch
      %11 = sbr.rel (0) target = $region9
    $region8: #{tpu_custom_call.1} parent=1 // pred_region
      _
    $region9: #{tpu_custom_call.1} parent=1 // pred_fallthru
      _
    %v12 = vld [vmem:[%s0] sm:$0xff]
    %v13 = vld [vmem:[%s0 + $0x8] sm:$0xff]
    %v14 = vld [vmem:[%s0 + $0x10] sm:$0xff]
    %v15 = vld [vmem:[%s0 + $0x18] sm:$0xff]
    %v16 = vld [vmem:[%s0 + $0x20] sm:$0xff]
    %v17 = vld [vmem:[%s0 + $0x28] sm:$0xff]
    %v18 = vld [vmem:[%s0 + $0x30] sm:$0xff]
    %v19 = vld [vmem:[%s0 + $0x38] sm:$0xff]
    %v20 = vld [vmem:[%s0 + $0x40] sm:$0xff]
    %v21 = vld [vmem:[%s0 + $0x48] sm:$0xff]
    %v22 = vld [vmem:[%s0 + $0x50] sm:$0xff]
    %v23 = vld [vmem:[%s0 + $0x58] sm:$0xff]
    %v24 = vld [vmem:[%s0 + $0x60] sm:$0xff]
    %v25 = vld [vmem:[%s0 + $0x68] sm:$0xff]
    %v26 = vld [vmem:[%s0 + $0x70] sm:$0xff]
    %v27 = vld [vmem:[%s0 + $0x78] sm:$0xff]
    %v28 = vld [vmem:[%s0 + $0x80] sm:$0xff]
    %v29 = vld [vmem:[%s0 + $0x88] sm:$0xff]
    %v30 = vld [vmem:[%s0 + $0x90] sm:$0xff]
    %v31 = vld [vmem:[%s0 + $0x98] sm:$0xff]
    %v32 = vld [vmem:[%s0 + $0xa0] sm:$0xff]
    %v33 = vld [vmem:[%s0 + $0xa8] sm:$0xff]
    %v34 = vld [vmem:[%s0 + $0xb0] sm:$0xff]
    %v35 = vld [vmem:[%s0 + $0xb8] sm:$0xff]
    %v36 = vld [vmem:[%s0 + $0xc0] sm:$0xff]
    %v37 = vld [vmem:[%s0 + $0xc8] sm:$0xff]
    %v38 = vld [vmem:[%s0 + $0xd0] sm:$0xff]
    %v39 = vld [vmem:[%s0 + $0xd8] sm:$0xff]
    %v40 = vld [vmem:[%s0 + $0xe0] sm:$0xff]
    %v41 = vld [vmem:[%s0 + $0xe8] sm:$0xff]
    %v42 = vld [vmem:[%s0 + $0xf0] sm:$0xff]
    %v43 = vld [vmem:[%s0 + $0xf8] sm:$0xff]
    %v44 = vld [vmem:[%s0 + $0x100] sm:$0xff]
    %v45 = vld [vmem:[%s0 + $0x108] sm:$0xff]
    %v46 = vld [vmem:[%s0 + $0x110] sm:$0xff]
    %v47 = vld [vmem:[%s0 + $0x118] sm:$0xff]
    %v48 = vld [vmem:[%s0 + $0x120] sm:$0xff]
    %v49 = vld [vmem:[%s0 + $0x128] sm:$0xff]
    %v50 = vld [vmem:[%s1] sm:$0xff]
    %v51 = vld [vmem:[%s1 + $0x8] sm:$0xff]
    %v52 = vld [vmem:[%s1 + $0x10] sm:$0xff]
    %v53 = vld [vmem:[%s1 + $0x18] sm:$0xff]
    %v54 = vld [vmem:[%s1 + $0x20] sm:$0xff]
    %v55 = vld [vmem:[%s1 + $0x28] sm:$0xff]
    %v56 = vld [vmem:[%s1 + $0x30] sm:$0xff]
    %v57 = vld [vmem:[%s1 + $0x38] sm:$0xff]
    %v58 = vld [vmem:[%s1 + $0x40] sm:$0xff]
    %v59 = vld [vmem:[%s1 + $0x48] sm:$0xff]
    %v60 = vld [vmem:[%s1 + $0x50] sm:$0xff]
    %v61 = vld [vmem:[%s1 + $0x58] sm:$0xff]
    %v62 = vld [vmem:[%s1 + $0x60] sm:$0xff]
    %v63 = vld [vmem:[%s1 + $0x68] sm:$0xff]
    %v64 = vld [vmem:[%s1 + $0x70] sm:$0xff]
    %v65 = vld [vmem:[%s1 + $0x78] sm:$0xff]
    %v66 = vld [vmem:[%s1 + $0x80] sm:$0xff]
    %v67 = vld [vmem:[%s1 + $0x88] sm:$0xff]
    %v68 = vld [vmem:[%s1 + $0x90] sm:$0xff]
    %v69 = vld [vmem:[%s1 + $0x98] sm:$0xff]
    %v70 = vld [vmem:[%s1 + $0xa0] sm:$0xff]
    %v71 = vld [vmem:[%s1 + $0xa8] sm:$0xff]
    %v72 = vld [vmem:[%s1 + $0xb0] sm:$0xff]
    %v73 = vld [vmem:[%s1 + $0xb8] sm:$0xff]
    %v74 = vld [vmem:[%s1 + $0xc0] sm:$0xff]
    %v75 = vld [vmem:[%s1 + $0xc8] sm:$0xff]
    %v76 = vld [vmem:[%s1 + $0xd0] sm:$0xff]
    %v77 = vld [vmem:[%s1 + $0xd8] sm:$0xff]
    %v78 = vld [vmem:[%s1 + $0xe0] sm:$0xff]
    %v79 = vld [vmem:[%s1 + $0xe8] sm:$0xff]
    %v80 = vld [vmem:[%s1 + $0xf0] sm:$0xff]
    %v81 = vld [vmem:[%s1 + $0xf8] sm:$0xff]
    %v82 = vld [vmem:[%s1 + $0x100] sm:$0xff]
    %v83 = vld [vmem:[%s1 + $0x108] sm:$0xff]
    %v84 = vld [vmem:[%s1 + $0x110] sm:$0xff]
    %v85 = vld [vmem:[%s1 + $0x118] sm:$0xff]
    %v86 = vld [vmem:[%s1 + $0x120] sm:$0xff]
    %v87 = vld [vmem:[%s1 + $0x128] sm:$0xff]
    %89 = vset.pattern.permute.xlu0 0
    %90 = vperm.xlu0 %89, %v12
    %v91 = vpop.permute.xlu0 %90
    %94 = vset.pattern.permute.xlu0 0
    %95 = vperm.xlu0 %94, %v13
    %v96 = vpop.permute.xlu0 %95
    %99 = vset.pattern.permute.xlu0 0
    %100 = vperm.xlu0 %99, %v14
    %v101 = vpop.permute.xlu0 %100
    %104 = vset.pattern.permute.xlu0 0
    %105 = vperm.xlu0 %104, %v15
    %v106 = vpop.permute.xlu0 %105
    %109 = vset.pattern.permute.xlu0 0
    %110 = vperm.xlu0 %109, %v16
    %v111 = vpop.permute.xlu0 %110
    %114 = vset.pattern.permute.xlu0 0
    %115 = vperm.xlu0 %114, %v17
    %v116 = vpop.permute.xlu0 %115
    %119 = vset.pattern.permute.xlu0 0
    %120 = vperm.xlu0 %119, %v18
    %v121 = vpop.permute.xlu0 %120
    %124 = vset.pattern.permute.xlu0 0
    %125 = vperm.xlu0 %124, %v19
    %v126 = vpop.permute.xlu0 %125
    %129 = vset.pattern.permute.xlu0 0
    %130 = vperm.xlu0 %129, %v20
    %v131 = vpop.permute.xlu0 %130
    %134 = vset.pattern.permute.xlu0 0
    %135 = vperm.xlu0 %134, %v21
    %v136 = vpop.permute.xlu0 %135
    %139 = vset.pattern.permute.xlu0 0
    %140 = vperm.xlu0 %139, %v22
    %v141 = vpop.permute.xlu0 %140
    %144 = vset.pattern.permute.xlu0 0
    %145 = vperm.xlu0 %144, %v23
    %v146 = vpop.permute.xlu0 %145
    %149 = vset.pattern.permute.xlu0 0
    %150 = vperm.xlu0 %149, %v24
    %v151 = vpop.permute.xlu0 %150
    %154 = vset.pattern.permute.xlu0 0
    %155 = vperm.xlu0 %154, %v25
    %v156 = vpop.permute.xlu0 %155
    %159 = vset.pattern.permute.xlu0 0
    %160 = vperm.xlu0 %159, %v26
    %v161 = vpop.permute.xlu0 %160
    %164 = vset.pattern.permute.xlu0 0
    %165 = vperm.xlu0 %164, %v27
    %v166 = vpop.permute.xlu0 %165
    %169 = vset.pattern.permute.xlu0 0
    %170 = vperm.xlu0 %169, %v28
    %v171 = vpop.permute.xlu0 %170
    %174 = vset.pattern.permute.xlu0 0
    %175 = vperm.xlu0 %174, %v29
    %v176 = vpop.permute.xlu0 %175
    %179 = vset.pattern.permute.xlu0 0
    %180 = vperm.xlu0 %179, %v30
    %v181 = vpop.permute.xlu0 %180
    %184 = vset.pattern.permute.xlu0 0
    %185 = vperm.xlu0 %184, %v31
    %v186 = vpop.permute.xlu0 %185
    %189 = vset.pattern.permute.xlu0 0
    %190 = vperm.xlu0 %189, %v32
    %v191 = vpop.permute.xlu0 %190
    %194 = vset.pattern.permute.xlu0 0
    %195 = vperm.xlu0 %194, %v33
    %v196 = vpop.permute.xlu0 %195
    %199 = vset.pattern.permute.xlu0 0
    %200 = vperm.xlu0 %199, %v34
    %v201 = vpop.permute.xlu0 %200
    %204 = vset.pattern.permute.xlu0 0
    %205 = vperm.xlu0 %204, %v35
    %v206 = vpop.permute.xlu0 %205
    %209 = vset.pattern.permute.xlu0 0
    %210 = vperm.xlu0 %209, %v36
    %v211 = vpop.permute.xlu0 %210
    %214 = vset.pattern.permute.xlu0 0
    %215 = vperm.xlu0 %214, %v37
    %v216 = vpop.permute.xlu0 %215
    %219 = vset.pattern.permute.xlu0 0
    %220 = vperm.xlu0 %219, %v38
    %v221 = vpop.permute.xlu0 %220
    %224 = vset.pattern.permute.xlu0 0
    %225 = vperm.xlu0 %224, %v39
    %v226 = vpop.permute.xlu0 %225
    %229 = vset.pattern.permute.xlu0 0
    %230 = vperm.xlu0 %229, %v40
    %v231 = vpop.permute.xlu0 %230
    %234 = vset.pattern.permute.xlu0 0
    %235 = vperm.xlu0 %234, %v41
    %v236 = vpop.permute.xlu0 %235
    %239 = vset.pattern.permute.xlu0 0
    %240 = vperm.xlu0 %239, %v42
    %v241 = vpop.permute.xlu0 %240
    %244 = vset.pattern.permute.xlu0 0
    %245 = vperm.xlu0 %244, %v43
    %v246 = vpop.permute.xlu0 %245
    %249 = vset.pattern.permute.xlu0 0
    %250 = vperm.xlu0 %249, %v44
    %v251 = vpop.permute.xlu0 %250
    %254 = vset.pattern.permute.xlu0 0
    %255 = vperm.xlu0 %254, %v45
    %v256 = vpop.permute.xlu0 %255
    %259 = vset.pattern.permute.xlu0 0
    %260 = vperm.xlu0 %259, %v46
    %v261 = vpop.permute.xlu0 %260
    %264 = vset.pattern.permute.xlu0 0
    %265 = vperm.xlu0 %264, %v47
    %v266 = vpop.permute.xlu0 %265
    %269 = vset.pattern.permute.xlu0 0
    %270 = vperm.xlu0 %269, %v48
    %v271 = vpop.permute.xlu0 %270
    %274 = vset.pattern.permute.xlu0 0
    %275 = vperm.xlu0 %274, %v49
    %v276 = vpop.permute.xlu0 %275
    %v278 = vmul.f32 %v91, %v50
    %v279 = vmul.f32 %v96, %v51
    %v280 = vmul.f32 %v101, %v52
    %v281 = vmul.f32 %v106, %v53
    %v282 = vmul.f32 %v111, %v54
    %v283 = vmul.f32 %v116, %v55
    %v284 = vmul.f32 %v121, %v56
    %v285 = vmul.f32 %v126, %v57
    %v286 = vmul.f32 %v131, %v58
    %v287 = vmul.f32 %v136, %v59
    %v288 = vmul.f32 %v141, %v60
    %v289 = vmul.f32 %v146, %v61
    %v290 = vmul.f32 %v151, %v62
    %v291 = vmul.f32 %v156, %v63
    %v292 = vmul.f32 %v161, %v64
    %v293 = vmul.f32 %v166, %v65
    %v294 = vmul.f32 %v171, %v66
    %v295 = vmul.f32 %v176, %v67
    %v296 = vmul.f32 %v181, %v68
    %v297 = vmul.f32 %v186, %v69
    %v298 = vmul.f32 %v191, %v70
    %v299 = vmul.f32 %v196, %v71
    %v300 = vmul.f32 %v201, %v72
    %v301 = vmul.f32 %v206, %v73
    %v302 = vmul.f32 %v211, %v74
    %v303 = vmul.f32 %v216, %v75
    %v304 = vmul.f32 %v221, %v76
    %v305 = vmul.f32 %v226, %v77
    %v306 = vmul.f32 %v231, %v78
    %v307 = vmul.f32 %v236, %v79
    %v308 = vmul.f32 %v241, %v80
    %v309 = vmul.f32 %v246, %v81
    %v310 = vmul.f32 %v251, %v82
    %v311 = vmul.f32 %v256, %v83
    %v312 = vmul.f32 %v261, %v84
    %v313 = vmul.f32 %v266, %v85
    %v314 = vmul.f32 %v271, %v86
    %v315 = vmul.f32 %v276, %v87
    %316 = vst [vmem:[#allocation2] sm:$0xff] %v278
    %317 = vst [vmem:[#allocation2 + $0x8] sm:$0xff] %v279
    %318 = vst [vmem:[#allocation2 + $0x10] sm:$0xff] %v280
    %319 = vst [vmem:[#allocation2 + $0x18] sm:$0xff] %v281
    %320 = vst [vmem:[#allocation2 + $0x20] sm:$0xff] %v282
    %321 = vst [vmem:[#allocation2 + $0x28] sm:$0xff] %v283
    %322 = vst [vmem:[#allocation2 + $0x30] sm:$0xff] %v284
    %323 = vst [vmem:[#allocation2 + $0x38] sm:$0xff] %v285
    %324 = vst [vmem:[#allocation2 + $0x40] sm:$0xff] %v286
    %325 = vst [vmem:[#allocation2 + $0x48] sm:$0xff] %v287
    %326 = vst [vmem:[#allocation2 + $0x50] sm:$0xff] %v288
    %327 = vst [vmem:[#allocation2 + $0x58] sm:$0xff] %v289
    %328 = vst [vmem:[#allocation2 + $0x60] sm:$0xff] %v290
    %329 = vst [vmem:[#allocation2 + $0x68] sm:$0xff] %v291
    %330 = vst [vmem:[#allocation2 + $0x70] sm:$0xff] %v292
    %331 = vst [vmem:[#allocation2 + $0x78] sm:$0xff] %v293
    %332 = vst [vmem:[#allocation2 + $0x80] sm:$0xff] %v294
    %333 = vst [vmem:[#allocation2 + $0x88] sm:$0xff] %v295
    %334 = vst [vmem:[#allocation2 + $0x90] sm:$0xff] %v296
    %335 = vst [vmem:[#allocation2 + $0x98] sm:$0xff] %v297
    %336 = vst [vmem:[#allocation2 + $0xa0] sm:$0xff] %v298
    %337 = vst [vmem:[#allocation2 + $0xa8] sm:$0xff] %v299
    %338 = vst [vmem:[#allocation2 + $0xb0] sm:$0xff] %v300
    %339 = vst [vmem:[#allocation2 + $0xb8] sm:$0xff] %v301
    %340 = vst [vmem:[#allocation2 + $0xc0] sm:$0xff] %v302
    %341 = vst [vmem:[#allocation2 + $0xc8] sm:$0xff] %v303
    %342 = vst [vmem:[#allocation2 + $0xd0] sm:$0xff] %v304
    %343 = vst [vmem:[#allocation2 + $0xd8] sm:$0xff] %v305
    %344 = vst [vmem:[#allocation2 + $0xe0] sm:$0xff] %v306
    %345 = vst [vmem:[#allocation2 + $0xe8] sm:$0xff] %v307
    %346 = vst [vmem:[#allocation2 + $0xf0] sm:$0xff] %v308
    %347 = vst [vmem:[#allocation2 + $0xf8] sm:$0xff] %v309
    %348 = vst [vmem:[#allocation2 + $0x100] sm:$0xff] %v310
    %349 = vst [vmem:[#allocation2 + $0x108] sm:$0xff] %v311
    %350 = vst [vmem:[#allocation2 + $0x110] sm:$0xff] %v312
    %351 = vst [vmem:[#allocation2 + $0x118] sm:$0xff] %v313
    %352 = vst [vmem:[#allocation2 + $0x120] sm:$0xff] %v314
    %353 = vst [vmem:[#allocation2 + $0x128] sm:$0xff] %v315
    // Predicated region
    $region10: #{tpu_custom_call.1} parent=1 // pred_check
      _
    $region11: #{tpu_custom_call.1} parent=1 // pred_check_branch
      %355 = sbr.rel (0) target = $region13
    $region12: #{tpu_custom_call.1} parent=1 // pred_region
      %s357 = ssub.s32 4864, 4864
      %358 = vsyncadd [#allocation3], %s357
      %s359 = sshll.u32 [#allocation2], 4
      %s360 = int_to_ptr.vmem [resolvable:$true] %s359
      %365 = dma.vmem_to_hbm [thread:$0]  %s360, 4864, %s2, [#allocation3], 128, 128, 8
    $region13: #{tpu_custom_call.1} parent=1 // pred_fallthru
      _
    // Predicated region
    $region14: #{tpu_custom_call.1} parent=1 // pred_check
      _
    $region15: #{tpu_custom_call.1} parent=1 // pred_check_branch
      %367 = sbr.rel (0) target = $region17
    $region16: #{tpu_custom_call.1} parent=1 // pred_region
      %368 = dma.done [#allocation3], 4864
    $region17: #{tpu_custom_call.1} parent=1 // pred_fallthru
      _
    %369 = vsyncpa [#allocation3], 1

</llo_original>
